<compile_context>
chip_gen: v6e
topology: v6e:2x2x1
jax: 0.10.0
libtpu: 0.0.40
codegen_flags: <defaults>
</compile_context>

<pallas_src>
import functools

import jax
import jax.numpy as jnp
from jax import lax
from jax.experimental import pallas as pl
from jax.experimental.pallas import tpu as pltpu


# ---------------------------------------------------------------------------
# Kernels
# ---------------------------------------------------------------------------

def _adain_rows_kernel(gb_ref, x_ref, o_ref, *, eps, inv_n):
    """Small/medium-HW path: each block spans full rows (all HW lanes)."""
    # Pass 1: stream the tile once for sum / sum-of-squares (f32 stats).
    xf = x_ref[...].astype(jnp.float32)               # (tile_r, HW)
    s = jnp.sum(xf, axis=-1, keepdims=True)           # (tile_r, 1)
    sq = jnp.sum(xf * xf, axis=-1, keepdims=True)     # (tile_r, 1)

    mean = s * inv_n
    var = jnp.maximum(sq * inv_n - mean * mean, 0.0)  # biased var, clamped
    inv = lax.rsqrt(var + eps)

    gb = gb_ref[...].astype(jnp.float32)              # (tile_r, 2) = [gamma|beta]
    gamma = gb[:, 0:1]
    beta = gb[:, 1:2]
    scale = gamma * inv
    shift = beta - mean * scale

    # Pass 2: re-read x_ref here (instead of reusing xf) so the compiler can
    # stream the tile again rather than spilling a tile-sized f32 temporary.
    o_ref[...] = (x_ref[...].astype(jnp.float32) * scale + shift).astype(o_ref.dtype)
    # TODO(synk): running_mean/running_var momentum update is a training-time
    # buffer side effect that does not affect the forward output; not emitted.


def _stats_kernel(x_ref, s_ref, sq_ref, *, hw_total, tile_hw):
    """Large-HW path, pass 1: accumulate per-row sum / sum-of-squares."""
    j = pl.program_id(1)

    @pl.when(j == 0)
    def _():
        s_ref[...] = jnp.zeros_like(s_ref)
        sq_ref[...] = jnp.zeros_like(sq_ref)

    xf = x_ref[...].astype(jnp.float32)               # (tile_r, tile_hw)
    # Mask lanes past the true HW extent in the (possibly partial) last block.
    col = lax.broadcasted_iota(jnp.int32, xf.shape, 1) + j * tile_hw
    xf = jnp.where(col < hw_total, xf, 0.0)

    s_ref[...] += jnp.sum(xf, axis=-1, keepdims=True)
    sq_ref[...] += jnp.sum(xf * xf, axis=-1, keepdims=True)


def _apply_kernel(ss_ref, x_ref, o_ref):
    """Large-HW path, pass 2: out = x * scale + shift (per row)."""
    ss = ss_ref[...]                                  # (tile_r, 2) f32
    scale = ss[:, 0:1]
    shift = ss[:, 1:2]
    o_ref[...] = (x_ref[...].astype(jnp.float32) * scale + shift).astype(o_ref.dtype)


# ---------------------------------------------------------------------------
# Wrapper
# ---------------------------------------------------------------------------

def _tpu_vmem_capacity_bytes():
    try:
        info = pltpu.get_tpu_info()
        return int(getattr(info, "vmem_capacity_bytes", 128 * 1024 * 1024))
    except Exception:
        return 128 * 1024 * 1024


def adain2d_forward(x, adain_params, W, b_lin, eps=1e-5, max_block_bytes=None):
    B, C, H, Wd = x.shape
    HW = H * Wd
    rows = B * C
    itemsize = x.dtype.itemsize

    # ---- AdaINLinear hoisted out of the kernel (tiny matmul; XLA handles it)
    lin = jnp.maximum(
        adain_params.astype(jnp.float32) @ W.astype(jnp.float32)
        + b_lin.astype(jnp.float32),
        0.0,
    )                                                 # (B, 2C)
    gamma = lin[:, :C].reshape(rows, 1)               # row order = b*C + c
    beta = lin[:, C:].reshape(rows, 1)
    gb = jnp.concatenate([gamma, beta], axis=1)       # (rows, 2): one DMA stream

    # ---- generation-aware block budget / scoped VMEM limit -----------------
    vmem_cap = _tpu_vmem_capacity_bytes()
    small_vmem = vmem_cap <= 64 * 1024 * 1024         # v7x-class: 64 MiB/TC, 2 TCs
    if small_vmem:
        target_block_bytes = int(2.5 * (1 << 20))
        vmem_limit = 28 * (1 << 20)
    else:                                             # v5e / v6e: 128 MiB VMEM
        target_block_bytes = 4 * (1 << 20)
        vmem_limit = 48 * (1 << 20)
    if max_block_bytes is not None:                   # override hook (tests)
        target_block_bytes = int(max_block_bytes)

    x2 = x.reshape(rows, HW)                          # no padding, no extra copies
    bytes_per_row = HW * itemsize

    if 8 * bytes_per_row <= target_block_bytes:
        # ------------- single-kernel path: one block spans full rows --------
        if rows <= 8:
            tile_r = rows                             # full dim satisfies (8,128) rule
        else:
            tile_r = max(8, min(target_block_bytes // bytes_per_row, rows) // 8 * 8)
            if small_vmem:
                # Keep both TensorCores busy: ensure >= 2 row-grid steps.
                while tile_r > 8 and pl.cdiv(rows, tile_r) < 2:
                    tile_r = max(8, (tile_r // 2) // 8 * 8)
        grid = (pl.cdiv(rows, tile_r),)

        out = pl.pallas_call(
            functools.partial(_adain_rows_kernel, eps=float(eps),
                              inv_n=float(1.0 / HW)),
            out_shape=jax.ShapeDtypeStruct((rows, HW), x.dtype),
            grid=grid,
            in_specs=[
                pl.BlockSpec((tile_r, 2), lambda r: (r, 0)),    # gamma|beta
                pl.BlockSpec((tile_r, HW), lambda r: (r, 0)),   # x rows
            ],
            out_specs=pl.BlockSpec((tile_r, HW), lambda r: (r, 0)),
            compiler_params=pltpu.CompilerParams(
                dimension_semantics=("parallel",),
                vmem_limit_bytes=vmem_limit,
            ),
            cost_estimate=pl.CostEstimate(
                flops=6 * rows * HW,
                transcendentals=rows,
                bytes_accessed=2 * rows * HW * itemsize + rows * 2 * 4,
            ),
        )(gb, x2)
        return out.reshape(B, C, H, Wd)

    # ---------------- large-HW path: tile the spatial axis ------------------
    tile_r = rows if rows < 8 else 8
    tile_hw = max(128, (target_block_bytes // (max(tile_r, 1) * itemsize)) // 128 * 128)
    tile_hw = min(tile_hw, ((HW + 127) // 128) * 128)
    grid2 = (pl.cdiv(rows, tile_r), pl.cdiv(HW, tile_hw))

    # Pass 1: per-row sum / sum-of-squares accumulated over the HW grid axis.
    s, sq = pl.pallas_call(
        functools.partial(_stats_kernel, hw_total=HW, tile_hw=tile_hw),
        out_shape=(jax.ShapeDtypeStruct((rows, 1), jnp.float32),
                   jax.ShapeDtypeStruct((rows, 1), jnp.float32)),
        grid=grid2,
        in_specs=[pl.BlockSpec((tile_r, tile_hw), lambda i, j: (i, j))],
        out_specs=(pl.BlockSpec((tile_r, 1), lambda i, j: (i, 0)),
                   pl.BlockSpec((tile_r, 1), lambda i, j: (i, 0))),
        compiler_params=pltpu.CompilerParams(
            dimension_semantics=("parallel", "arbitrary"),
            vmem_limit_bytes=vmem_limit,
        ),
        cost_estimate=pl.CostEstimate(
            flops=3 * rows * HW,
            transcendentals=0,
            bytes_accessed=rows * HW * itemsize,
        ),
    )(x2)

    # Tiny per-row math (rows x 1) stays in JAX.
    inv_n = jnp.float32(1.0 / HW)
    mean = s * inv_n
    var = jnp.maximum(sq * inv_n - mean * mean, 0.0)
    inv = lax.rsqrt(var + jnp.float32(eps))
    scale = gamma.astype(jnp.float32) * inv
    shift = beta.astype(jnp.float32) - mean * scale
    ss = jnp.concatenate([scale, shift], axis=1)      # (rows, 2) f32

    # Pass 2: fused scale/shift over the same tiling (both axes parallel).
    out = pl.pallas_call(
        _apply_kernel,
        out_shape=jax.ShapeDtypeStruct((rows, HW), x.dtype),
        grid=grid2,
        in_specs=[
            pl.BlockSpec((tile_r, 2), lambda i, j: (i, 0)),
            pl.BlockSpec((tile_r, tile_hw), lambda i, j: (i, j)),
        ],
        out_specs=pl.BlockSpec((tile_r, tile_hw), lambda i, j: (i, j)),
        compiler_params=pltpu.CompilerParams(
            dimension_semantics=("parallel", "parallel"),
            vmem_limit_bytes=vmem_limit,
        ),
        cost_estimate=pl.CostEstimate(
            flops=2 * rows * HW,
            transcendentals=0,
            bytes_accessed=2 * rows * HW * itemsize,
        ),
    )(ss, x2)
    return out.reshape(B, C, H, Wd)


# ---------------------------------------------------------------------------
# Pure-JAX reference (mirrors F.batch_norm on (1, B*C, H, W), training=True)
# ---------------------------------------------------------------------------

def adain2d_reference(x, adain_params, W, b_lin, eps=1e-5):
    B, C, H, Wd = x.shape
    lin = jnp.maximum(adain_params @ W + b_lin, 0.0)  # (B, 2C)
    gamma, beta = lin[:, :C], lin[:, C:]
    xr = x.reshape(B, C, -1).astype(jnp.float32)
    mean = xr.mean(axis=-1, keepdims=True)
    var = ((xr - mean) ** 2).mean(axis=-1, keepdims=True)
    xhat = (xr - mean) / jnp.sqrt(var + eps)
    out = xhat * gamma[:, :, None] + beta[:, :, None]
    return out.reshape(B, C, H, Wd).astype(x.dtype)


if __name__ == "__main__":
    # Module-consistent small shapes: batch=2, in_dim(=channels)=4,
    # spatial=16x16, z_dim=8.
    B, C, H, Wd, Z = 2, 4, 16, 16, 8

    key = jax.random.PRNGKey(0)
    kx, kz, kw, kb = jax.random.split(key, 4)

    x = jax.random.normal(kx, (B, C, H, Wd), dtype=jnp.float32)
    z = jax.random.normal(kz, (B, Z), dtype=jnp.float32)
    # nn.Linear(z_dim, 2*in_dim): we keep the (in, out) transpose of the weight.
    W = jax.random.normal(kw, (Z, 2 * C), dtype=jnp.float32) * 0.2
    b_lin = jax.random.normal(kb, (1, 2 * C), dtype=jnp.float32) * 0.1

    ref = adain2d_reference(x, z, W, b_lin, eps=1e-5)

    # 1) Primary single-kernel rows path.
    out = jax.block_until_ready(adain2d_forward(x, z, W, b_lin, eps=1e-5))
    assert out.shape == (B, C, H, Wd)
    assert jnp.allclose(out, ref, atol=1e-4, rtol=1e-4), "rows-path mismatch"

    # 2) Exercise the large-HW (chunked spatial, stats+apply) path by forcing
    #    a tiny block budget; same inputs, same reference.
    out_chunked = jax.block_until_ready(
        adain2d_forward(x, z, W, b_lin, eps=1e-5, max_block_bytes=8 * 128 * 4))
    assert jnp.allclose(out_chunked, ref, atol=1e-4, rtol=1e-4), "chunked-path mismatch"

    # 3) Exercise non-128-multiple lane width and a partial boundary row block
    #    (rows = 12 with tile_r = 8; HW = 100 = full lane dim).
    kx2, kz2 = jax.random.split(kb, 2)
    x3 = jax.random.normal(kx2, (3, C, 10, 10), dtype=jnp.float32)
    z3 = jax.random.normal(kz2, (3, Z), dtype=jnp.float32)
    out3 = jax.block_until_ready(adain2d_forward(x3, z3, W, b_lin, eps=1e-5))
    ref3 = adain2d_reference(x3, z3, W, b_lin, eps=1e-5)
    assert jnp.allclose(out3, ref3, atol=1e-4, rtol=1e-4), "boundary-path mismatch"

    print("KERNEL_OK")
</pallas_src>

<mosaic_0001>
module attributes {stable_mosaic.version = 11 : i64} {
  func.func @_adain_rows_kernel(%arg0: i32, %arg1: memref<8x2xf32, #tpu.memory_space<vmem>>, %arg2: memref<8x256xf32, #tpu.memory_space<vmem>>, %arg3: memref<8x256xf32, #tpu.memory_space<vmem>>) attributes {dimension_semantics = [#tpu.dimension_semantics<parallel>], iteration_bounds = array<i64: 1>, scalar_prefetch = 0 : i64, scratch_operands = 0 : i64, tpu.core_type = #tpu.core_type<tc>, window_params = [{transform_indices = @transform_0, window_bounds = array<i64: 8, 2>}, {transform_indices = @transform_1, window_bounds = array<i64: 8, 256>}, {transform_indices = @transform_2, window_bounds = array<i64: 8, 256>}]} {
    %c0 = arith.constant 0 : index
    %c0_0 = arith.constant 0 : index
    %0 = vector.load %arg2[%c0, %c0_0] : memref<8x256xf32, #tpu.memory_space<vmem>>, vector<8x256xf32>
    %cst = arith.constant dense<0.000000e+00> : vector<8xf32>
    %1 = vector.multi_reduction <add>, %0, %cst [1] : vector<8x256xf32> to vector<8xf32>
    %2 = vector.shape_cast %1 : vector<8xf32> to vector<8x1xf32>
    %3 = arith.mulf %0, %0 : vector<8x256xf32>
    %cst_1 = arith.constant dense<0.000000e+00> : vector<8xf32>
    %4 = vector.multi_reduction <add>, %3, %cst_1 [1] : vector<8x256xf32> to vector<8xf32>
    %5 = vector.shape_cast %4 : vector<8xf32> to vector<8x1xf32>
    %cst_2 = arith.constant 3.906250e-03 : f32
    %6 = vector.broadcast %cst_2 : f32 to vector<8x1xf32>
    %7 = arith.mulf %2, %6 : vector<8x1xf32>
    %cst_3 = arith.constant 3.906250e-03 : f32
    %8 = vector.broadcast %cst_3 : f32 to vector<8x1xf32>
    %9 = arith.mulf %5, %8 : vector<8x1xf32>
    %10 = arith.mulf %7, %7 : vector<8x1xf32>
    %11 = arith.subf %9, %10 : vector<8x1xf32>
    %cst_4 = arith.constant 0.000000e+00 : f32
    %12 = vector.broadcast %cst_4 : f32 to vector<8x1xf32>
    %13 = arith.maximumf %11, %12 : vector<8x1xf32>
    %cst_5 = arith.constant 9.99999974E-6 : f32
    %14 = vector.broadcast %cst_5 : f32 to vector<8x1xf32>
    %15 = arith.addf %13, %14 : vector<8x1xf32>
    %16 = math.rsqrt %15 : vector<8x1xf32>
    %c0_6 = arith.constant 0 : index
    %c0_7 = arith.constant 0 : index
    %17 = vector.load %arg1[%c0_6, %c0_7] : memref<8x2xf32, #tpu.memory_space<vmem>>, vector<8x2xf32>
    %18 = vector.extract_strided_slice %17 {offsets = [0, 0], sizes = [8, 1], strides = [1, 1]} : vector<8x2xf32> to vector<8x1xf32>
    %19 = vector.extract_strided_slice %17 {offsets = [0, 1], sizes = [8, 1], strides = [1, 1]} : vector<8x2xf32> to vector<8x1xf32>
    %20 = arith.mulf %18, %16 : vector<8x1xf32>
    %21 = arith.mulf %7, %20 : vector<8x1xf32>
    %22 = arith.subf %19, %21 : vector<8x1xf32>
    %c0_8 = arith.constant 0 : index
    %c0_9 = arith.constant 0 : index
    %23 = vector.load %arg2[%c0_8, %c0_9] : memref<8x256xf32, #tpu.memory_space<vmem>>, vector<8x256xf32>
    %24 = vector.broadcast %20 : vector<8x1xf32> to vector<8x256xf32>
    %25 = arith.mulf %23, %24 : vector<8x256xf32>
    %26 = vector.broadcast %22 : vector<8x1xf32> to vector<8x256xf32>
    %27 = arith.addf %25, %26 : vector<8x256xf32>
    %c0_10 = arith.constant 0 : index
    %c0_11 = arith.constant 0 : index
    %28 = vector.load %arg3[%c0_10, %c0_11] : memref<8x256xf32, #tpu.memory_space<vmem>>, vector<8x256xf32>
    tpu.vector_store %arg3[%c0_10, %c0_11], %27 {strides = array<i32>} : memref<8x256xf32, #tpu.memory_space<vmem>>, vector<8x256xf32>,
    return
  }
  func.func @transform_0(%arg0: i32) -> (i32, i32) {
    %c0_i32 = arith.constant 0 : i32
    %c0_i32_0 = arith.constant 0 : i32
    return %arg0, %c0_i32 : i32, i32
  }
  func.func @transform_1(%arg0: i32) -> (i32, i32) {
    %c0_i32 = arith.constant 0 : i32
    %c0_i32_0 = arith.constant 0 : i32
    return %arg0, %c0_i32 : i32, i32
  }
  func.func @transform_2(%arg0: i32) -> (i32, i32) {
    %c0_i32 = arith.constant 0 : i32
    %c0_i32_0 = arith.constant 0 : i32
    return %arg0, %c0_i32 : i32, i32
  }
}

</mosaic_0001>

<llo_original>
// kernel: tpu_custom_call.1
$region0: #{tpu_custom_call.1}
  #allocation0 [shape = 'u32[]', space=smem, size = 0x4, offset = 0x4, fixed_abs, tag = 'smem constant byte address 0x4 - core index']
  #allocation1 [shape = 'u32[144,128]{1,0:T(1,128)}', space=vmem, size = 0x12000, scoped, tag = 'internal scratch']
  %s0 = inlined_call_operand.vmem [shape: f32[8,2], index: 0, kind: input, shape index: {}]
  %s1 = inlined_call_operand.hbm [shape: f32[8,256], index: 1, kind: input, shape index: {}]
  %s2 = inlined_call_operand.hbm [shape: f32[8,256], index: 2, kind: output, shape index: {}]
  %s3 = sld [smem:[#allocation0]]
  $region22: #{tpu_custom_call.1} parent=0
    _
  %s5 = ssub.s32 1, %s3
  %s6 = scalar_select 0, %s5, %s3
  $region1: #{tpu_custom_call.1} parent=0
    #allocation2 [shape = 'u8[8192]{0}', space=vmem, size = 0x2000, scoped, tag = 'input window, operand 1, single buffered']
    #allocation3 [shape = 's32[1]{0}', space=sflag, size = 0x4, scoped, tag = 'scoped memory for tpu_custom_call.1']
    #allocation4 [shape = 's32[1]{0}', space=sflag, size = 0x4, scoped, tag = 'scoped memory for tpu_custom_call.1']
    #allocation5 [shape = 'u8[8192]{0}', space=vmem, size = 0x2000, scoped, tag = 'output window, operand 0, single buffered']
    %7 = vsyncpa [#allocation3], 0
    %8 = vsyncpa [#allocation4], 0
    // Predicated region
    $region2: #{tpu_custom_call.1} parent=1 // pred_check
      _
    $region3: #{tpu_custom_call.1} parent=1 // pred_check_branch
      %10 = sbr.rel (0) target = $region5
    $region4: #{tpu_custom_call.1} parent=1 // pred_region
      _
    $region5: #{tpu_custom_call.1} parent=1 // pred_fallthru
      _
    // Predicated region
    $region6: #{tpu_custom_call.1} parent=1 // pred_check
      _
    $region7: #{tpu_custom_call.1} parent=1 // pred_check_branch
      %12 = sbr.rel (0) target = $region9
    $region8: #{tpu_custom_call.1} parent=1 // pred_region
      %s14 = ssub.s32 256, 256
      %15 = vsyncadd [#allocation3], %s14
      %s17 = sshll.u32 [#allocation2], 4
      %s18 = int_to_ptr.vmem [resolvable:$true] %s17
      %20 = dma.hbm_to_vmem [thread:$0]  %s1, 256, %s18, [#allocation3]
    $region9: #{tpu_custom_call.1} parent=1 // pred_fallthru
      _
    // Predicated region
    $region10: #{tpu_custom_call.1} parent=1 // pred_check
      _
    $region11: #{tpu_custom_call.1} parent=1 // pred_check_branch
      %22 = sbr.rel (0) target = $region13
    $region12: #{tpu_custom_call.1} parent=1 // pred_region
      %23 = dma.done [#allocation3], 256
    $region13: #{tpu_custom_call.1} parent=1 // pred_fallthru
      _
    %v24 = vld [vmem:[#allocation2] sm:$0xff]
    %v25 = vld [vmem:[#allocation2 + $0x8] sm:$0xff]
    %v26 = vadd.f32 %v24, %v25
    %27 = vadd.xlane.f32.xlu0 %v26
    %v28 = vpop.xlane.xlu0 %27
    %v29 = vmul.f32 %v24, %v24
    %v30 = vmul.f32 %v25, %v25
    %v31 = vadd.f32 %v29, %v30
    %32 = vadd.xlane.f32.xlu0 %v31
    %v33 = vpop.xlane.xlu0 %32
    %v34 = vmul.f32 %v28, 0.00390625
    %v35 = vmul.f32 %v33, 0.00390625
    %v36 = vmul.f32 %v34, %v34
    %v37 = vsub.f32 %v35, %v36
    %v38 = vmax.f32 %v37, 0.0
    %v39 = vadd.f32 %v38, 1e-05
    %v40 = vrsqrt.pop %v39
    %v41 = vld [vmem:[%s0] sm:$0xff]
    %v42 = vmul.f32 %v41, %v40
    %v43 = vmul.f32 %v34, %v42
    %45 = vrot.lane.b32.xlu0 %v43, 1
    %v46 = vpop.permute.xlu0 %45
    %v48 = vsub.f32 %v41, %v46
    %50 = vset.pattern.permute.xlu0 0
    %51 = vperm.xlu0 %50, %v42
    %v52 = vpop.permute.xlu0 %51
    %v54 = vmul.f32 %v24, %v52
    %v55 = vmul.f32 %v25, %v52
    %57 = vset.pattern.permute.xlu0 1
    %58 = vperm.xlu0 %57, %v48
    %v59 = vpop.permute.xlu0 %58
    %v61 = vadd.f32 %v54, %v59
    %v62 = vadd.f32 %v55, %v59
    %63 = vst [vmem:[#allocation5] sm:$0xff] %v61
    %64 = vst [vmem:[#allocation5 + $0x8] sm:$0xff] %v62
    // Predicated region
    $region14: #{tpu_custom_call.1} parent=1 // pred_check
      _
    $region15: #{tpu_custom_call.1} parent=1 // pred_check_branch
      %66 = sbr.rel (0) target = $region17
    $region16: #{tpu_custom_call.1} parent=1 // pred_region
      %s68 = ssub.s32 256, 256
      %69 = vsyncadd [#allocation4], %s68
      %s71 = sshll.u32 [#allocation5], 4
      %s72 = int_to_ptr.vmem [resolvable:$true] %s71
      %74 = dma.vmem_to_hbm [thread:$0]  %s72, 256, %s2, [#allocation4]
    $region17: #{tpu_custom_call.1} parent=1 // pred_fallthru
      _
    // Predicated region
    $region18: #{tpu_custom_call.1} parent=1 // pred_check
      _
    $region19: #{tpu_custom_call.1} parent=1 // pred_check_branch
      %76 = sbr.rel (0) target = $region21
    $region20: #{tpu_custom_call.1} parent=1 // pred_region
      %77 = dma.done [#allocation4], 256
    $region21: #{tpu_custom_call.1} parent=1 // pred_fallthru
      _
    %78 = vsyncpa [#allocation3], 1
    %79 = vsyncpa [#allocation4], 1

</llo_original>
